<compile_context>
chip_gen: v7x
topology: tpu7x:2x2x1
jax: 0.10.0
libtpu: 0.0.40
codegen_flags: <defaults>
</compile_context>

<pallas_src>
import numpy as np
import jax
import jax.numpy as jnp
from jax.experimental import pallas as pl
from jax.experimental.pallas import tpu as pltpu


# --------------------------------- kernel ------------------------------------

def _make_kernel(*, q_num, s_num, C, P, n_attn):
    agent_idx = q_num // 2

    def kernel(qx_ref, qm_ref, sx_ref, sm_ref,
               cw_ref, cb_ref, wp_ref, bp_ref, out_ref):
        """One batch element per grid step.

        Ref shapes (per step):
          qx: (1, in_dim, q_num*P)   qm: (1, 1, q_num*P)     (channel-first)
          sx: (1, in_dim, s_num*P)   sm: (1, 1, s_num*P)
          cw: (2, C, in_dim)  cb: (2, C, 1)                  [conv_q, conv_s]
          wp: (nw, C)  bp: (nw, 1)   stacked projections:
              rows [0, n_attn*C)            linear_q of each head (agent token)
              rows [n_attn*C, n_attn*C+2C)  linear_k ; linear_v of the s stream
              rows [.., +2C)                linear_k ; linear_v of the q stream
          out: (1, q_num*n_attn*C, P)       frame-major, heads concat on channel
        """
        f32 = jnp.float32
        wp = wp_ref[...]
        bp = bp_ref[...]

        def affine(w, b, x):
            # channel-major 1x1 conv / nn.Linear:  y = W @ x + b
            return jnp.dot(w, x, preferred_element_type=f32) + b

        # Masked 1x1 convs; all frames merged into the lane (N) axis.
        q_tok = affine(cw_ref[0], cb_ref[0], qx_ref[0] * qm_ref[0])   # (C, q_num*P)
        s_tok = affine(cw_ref[1], cb_ref[1], sx_ref[0] * sm_ref[0])   # (C, s_num*P)

        a_tok = q_tok[:, agent_idx * P:(agent_idx + 1) * P]           # (C, P)

        # Stacked projections (only the ones the output depends on).
        na = n_attn * C
        a_q = affine(wp[0:na], bp[0:na], a_tok)                       # (n_attn*C, P)
        kv_s = affine(wp[na:na + 2 * C], bp[na:na + 2 * C], s_tok)    # (2C, s_num*P)
        if n_attn == 2:
            kv_q = affine(wp[na + 2 * C:na + 4 * C],
                          bp[na + 2 * C:na + 4 * C], q_tok)           # (2C, q_num*P)

        def sum_all(x):                      # (C, P) -> (1, 1)
            return jnp.sum(jnp.sum(x, axis=1, keepdims=True),
                           axis=0, keepdims=True)

        def agent_context(aq_i, kv, num_kv):
            # as_attn: one agent query vs num_kv keys; scale = 1/sqrt(num_a) = 1.
            k = kv[0:C]
            v = kv[C:2 * C]
            qk = jnp.concatenate(
                [sum_all(aq_i * k[:, j * P:(j + 1) * P]) for j in range(num_kv)],
                axis=1)                                               # (1, num_kv)
            m = jnp.max(qk, axis=1, keepdims=True)
            e = jnp.exp(qk - m)
            attn_w = e / jnp.sum(e, axis=1, keepdims=True)            # (1, num_kv)
            ctx = jnp.zeros((C, P), f32)
            for j in range(num_kv):
                ctx = ctx + attn_w[0:1, j:j + 1] * v[:, j * P:(j + 1) * P]
            # The second (qa) attention has a single key, so its softmax is
            # exactly 1 and it only broadcasts as_token over the query frames;
            # return as_token and add the per-frame residual below.
            return a_tok + ctx                                        # (C, P)

        as_tok = [agent_context(a_q[0:C], kv_s, s_num)]
        if n_attn == 2:
            as_tok.append(agent_context(a_q[C:2 * C], kv_q, q_num))

        # out[frame, head*C + c, p] = q_tok[frame, c, p] + as_tok[head][c, p]
        rows = []
        for f in range(q_num):
            frame = q_tok[:, f * P:(f + 1) * P]                       # residual
            for t in as_tok:
                rows.append(frame + t)
        out_ref[0] = jnp.concatenate(rows, axis=0)                    # (q_num*n_attn*C, P)

    return kernel


# ------------------------------ module forward -------------------------------

def domain_agent_network(params, q_feat, s_feat, q_mask, s_mask, batch):
    q_frame, in_dim, h, w = q_feat.shape
    s_frame = s_feat.shape[0]
    q_num = q_frame // batch
    s_num = s_frame // batch
    P = h * w
    C = params["conv_w"].shape[1]
    n_attn = params["proj_w"].shape[0]

    # Host-side layout prep (tiny inputs, fused by XLA): channel-first slabs
    # with the frame axis merged into the lane axis, so every in-kernel matmul
    # is a single un-batched 2D matmul with N = num_frames * P.
    def chan_first(x, num, ch):
        x = x.reshape(batch, num, ch, P)
        return jnp.transpose(x, (0, 2, 1, 3)).reshape(batch, ch, num * P)

    qx = chan_first(q_feat, q_num, in_dim)
    qm = chan_first(q_mask, q_num, 1)
    sx = chan_first(s_feat, s_num, in_dim)
    sm = chan_first(s_mask, s_num, 1)

    # Stacked projection weights: [q0, (q1), k0, v0, (k1, v1)]
    pw, pb = params["proj_w"], params["proj_b"]
    w_parts = [pw[i, 0] for i in range(n_attn)] + [pw[0, 1], pw[0, 2]]
    b_parts = [pb[i, 0] for i in range(n_attn)] + [pb[0, 1], pb[0, 2]]
    if n_attn == 2:
        w_parts += [pw[1, 1], pw[1, 2]]
        b_parts += [pb[1, 1], pb[1, 2]]
    w_proj = jnp.concatenate(w_parts, axis=0)        # (nw, C)
    b_proj = jnp.concatenate(b_parts, axis=0)        # (nw, 1)
    nw = (n_attn + (4 if n_attn == 2 else 2)) * C

    kernel = _make_kernel(q_num=q_num, s_num=s_num, C=C, P=P, n_attn=n_attn)

    out = pl.pallas_call(
        kernel,
        out_shape=jax.ShapeDtypeStruct((batch, q_num * n_attn * C, P),
                                       jnp.float32),
        grid=(batch,),
        in_specs=[
            pl.BlockSpec((1, in_dim, q_num * P), lambda b: (b, 0, 0)),
            pl.BlockSpec((1, 1, q_num * P), lambda b: (b, 0, 0)),
            pl.BlockSpec((1, in_dim, s_num * P), lambda b: (b, 0, 0)),
            pl.BlockSpec((1, 1, s_num * P), lambda b: (b, 0, 0)),
            pl.BlockSpec((2, C, in_dim), lambda b: (0, 0, 0)),
            pl.BlockSpec((2, C, 1), lambda b: (0, 0, 0)),
            pl.BlockSpec((nw, C), lambda b: (0, 0)),
            pl.BlockSpec((nw, 1), lambda b: (0, 0)),
        ],
        out_specs=pl.BlockSpec((1, q_num * n_attn * C, P), lambda b: (b, 0, 0)),
        compiler_params=pltpu.CompilerParams(
            dimension_semantics=("parallel",)),
    )(qx, qm, sx, sm, params["conv_w"], params["conv_b"], w_proj, b_proj)

    # (batch, frame, head*C, P) in memory order -> NCHW: free reshape.
    return out.reshape(batch * q_num, n_attn * C, h, w)


# --------------------------- parameters & reference --------------------------

def init_params(key, in_dim, h_dim, with_self_attn=True):
    n_attn = 2 if with_self_attn else 1
    ks = jax.random.split(key, 4)

    def w(k, shape, scale=0.1):
        return scale * jax.random.normal(k, shape, dtype=jnp.float32)

    return {
        "conv_w": w(ks[0], (2, h_dim, in_dim)),          # [conv_q, conv_s] (O, I)
        "conv_b": w(ks[1], (2, h_dim, 1), 0.01),
        "proj_w": w(ks[2], (n_attn, 3, h_dim, h_dim)),   # [qs, qq] x [q, k, v]
        "proj_b": w(ks[3], (n_attn, 3, h_dim, 1), 0.01),
    }


def reference_forward(params, q_feat, s_feat, q_mask, s_mask, batch):
    """Pure-JAX mirror of the PyTorch DomainAgentNetwork (for validation)."""
    q_frame, in_dim, h, w = q_feat.shape
    s_frame = s_feat.shape[0]
    q_num = q_frame // batch
    s_num = s_frame // batch
    agent_idx = q_num // 2
    C = params["conv_w"].shape[1]
    hp = jax.lax.Precision.HIGHEST

    def conv1x1(x, m, i):
        y = jnp.einsum('fchw,oc->fohw', x * m, params["conv_w"][i], precision=hp)
        return y + params["conv_b"][i].reshape(1, C, 1, 1)

    def tokens(feat, num):
        return (feat.reshape(batch, num, C, h, w)
                .transpose(0, 1, 3, 4, 2).reshape(batch, num, h * w, C))

    q_token = tokens(conv1x1(q_feat, q_mask, 0), q_num)
    s_token = tokens(conv1x1(s_feat, s_mask, 1), s_num)
    a_token = q_token[:, agent_idx:agent_idx + 1]

    def linear(tok, i, j):
        return (jnp.einsum('bnpc,oc->bnpo', tok, params["proj_w"][i, j],
                           precision=hp)
                + params["proj_b"][i, j][:, 0])

    def attention(q, k, v):
        qk = jnp.einsum('bqd,bkd->bqk', q, k, precision=hp)
        qk = qk / (qk.shape[1] ** 0.5)
        return jnp.einsum('bqk,bkd->bqd', jax.nn.softmax(qk, axis=-1), v,
                          precision=hp)

    def agent_attn(i, kv_token):
        nkv = kv_token.shape[1]
        a_q = linear(a_token, i, 0).reshape(batch, 1, -1)
        kv_k = linear(kv_token, i, 1).reshape(batch, nkv, -1)
        kv_v = linear(kv_token, i, 2).reshape(batch, nkv, -1)
        q_q = linear(q_token, i, 0).reshape(batch, q_num, -1)
        a_k = linear(a_token, i, 1).reshape(batch, 1, -1)
        as_tok = a_token.reshape(batch, 1, -1) + attention(a_q, kv_k, kv_v)
        return q_token.reshape(batch, q_num, -1) + attention(q_q, a_k, as_tok)

    def to_nchw(tok):
        return (tok.reshape(batch, q_num, h, w, C)
                .transpose(0, 1, 4, 2, 3).reshape(batch * q_num, C, h, w))

    qs = to_nchw(agent_attn(0, s_token))
    if params["proj_w"].shape[0] == 2:
        qq = to_nchw(agent_attn(1, q_token))
        return jnp.concatenate([qs, qq], axis=1)
    return qs


# ------------------------------------ main ------------------------------------

if __name__ == "__main__":
    in_dim, h_dim = 4, 8
    batch, q_num, s_num = 2, 4, 3
    h = w = 8
    q_frame, s_frame = batch * q_num, batch * s_num

    key = jax.random.PRNGKey(0)
    k1, k2, k3, k4, k5 = jax.random.split(key, 5)

    q_feat = jax.random.normal(k1, (q_frame, in_dim, h, w), dtype=jnp.float32)
    s_feat = jax.random.normal(k2, (s_frame, in_dim, h, w), dtype=jnp.float32)
    q_mask = (jax.random.uniform(k3, (q_frame, 1, h, w)) > 0.3).astype(jnp.float32)
    s_mask = (jax.random.uniform(k4, (s_frame, 1, h, w)) > 0.3).astype(jnp.float32)

    params = init_params(k5, in_dim, h_dim, with_self_attn=True)

    fwd = jax.jit(lambda qf, sf, qm, sm:
                  domain_agent_network(params, qf, sf, qm, sm, batch))
    out = jax.block_until_ready(fwd(q_feat, s_feat, q_mask, s_mask))

    assert out.shape == (batch * q_num, 2 * h_dim, h, w), out.shape
    assert out.dtype == jnp.float32

    ref = jax.jit(lambda qf, sf, qm, sm:
                  reference_forward(params, qf, sf, qm, sm, batch))(
                      q_feat, s_feat, q_mask, s_mask)
    np.testing.assert_allclose(np.asarray(out), np.asarray(ref),
                               rtol=1e-2, atol=1e-2)

    print("KERNEL_OK")
</pallas_src>

<mosaic_0001>
module attributes {stable_mosaic.version = 11 : i64} {
  func.func @kernel(%arg0: i32, %arg1: memref<1x4x256xf32, #tpu.memory_space<vmem>>, %arg2: memref<1x1x256xf32, #tpu.memory_space<vmem>>, %arg3: memref<1x4x192xf32, #tpu.memory_space<vmem>>, %arg4: memref<1x1x192xf32, #tpu.memory_space<vmem>>, %arg5: memref<2x8x4xf32, #tpu.memory_space<vmem>>, %arg6: memref<2x8x1xf32, #tpu.memory_space<vmem>>, %arg7: memref<48x8xf32, #tpu.memory_space<vmem>>, %arg8: memref<48x1xf32, #tpu.memory_space<vmem>>, %arg9: memref<1x64x64xf32, #tpu.memory_space<vmem>>) attributes {dimension_semantics = [#tpu.dimension_semantics<parallel>], iteration_bounds = array<i64: 2>, scalar_prefetch = 0 : i64, scratch_operands = 0 : i64, tpu.core_type = #tpu.core_type<tc>, window_params = [{transform_indices = @transform_0, window_bounds = array<i64: 1, 4, 256>}, {transform_indices = @transform_1, window_bounds = array<i64: 1, 1, 256>}, {transform_indices = @transform_2, window_bounds = array<i64: 1, 4, 192>}, {transform_indices = @transform_3, window_bounds = array<i64: 1, 1, 192>}, {pipeline_mode = #tpu.pipeline_mode<synchronous>, transform_indices = @transform_4, window_bounds = array<i64: 2, 8, 4>}, {pipeline_mode = #tpu.pipeline_mode<synchronous>, transform_indices = @transform_5, window_bounds = array<i64: 2, 8, 1>}, {pipeline_mode = #tpu.pipeline_mode<synchronous>, transform_indices = @transform_6, window_bounds = array<i64: 48, 8>}, {pipeline_mode = #tpu.pipeline_mode<synchronous>, transform_indices = @transform_7, window_bounds = array<i64: 48, 1>}, {transform_indices = @transform_8, window_bounds = array<i64: 1, 64, 64>}]} {
    %c0 = arith.constant 0 : index
    %c0_0 = arith.constant 0 : index
    %0 = vector.load %arg7[%c0, %c0_0] : memref<48x8xf32, #tpu.memory_space<vmem>>, vector<48x8xf32>
    %c0_1 = arith.constant 0 : index
    %c0_2 = arith.constant 0 : index
    %1 = vector.load %arg8[%c0_1, %c0_2] : memref<48x1xf32, #tpu.memory_space<vmem>>, vector<48x1xf32>
    %c0_3 = arith.constant 0 : index
    %c0_4 = arith.constant 0 : index
    %c0_5 = arith.constant 0 : index
    %2 = vector.load %arg5[%c0_3, %c0_4, %c0_5] : memref<2x8x4xf32, #tpu.memory_space<vmem>>, vector<1x8x4xf32>
    %3 = vector.shape_cast %2 : vector<1x8x4xf32> to vector<8x4xf32>
    %c0_6 = arith.constant 0 : index
    %c0_7 = arith.constant 0 : index
    %c0_8 = arith.constant 0 : index
    %4 = vector.load %arg6[%c0_6, %c0_7, %c0_8] : memref<2x8x1xf32, #tpu.memory_space<vmem>>, vector<1x8x1xf32>
    %5 = vector.shape_cast %4 : vector<1x8x1xf32> to vector<8x1xf32>
    %c0_9 = arith.constant 0 : index
    %c0_10 = arith.constant 0 : index
    %c0_11 = arith.constant 0 : index
    %6 = vector.load %arg1[%c0_9, %c0_10, %c0_11] : memref<1x4x256xf32, #tpu.memory_space<vmem>>, vector<1x4x256xf32>
    %7 = vector.shape_cast %6 : vector<1x4x256xf32> to vector<4x256xf32>
    %c0_12 = arith.constant 0 : index
    %c0_13 = arith.constant 0 : index
    %c0_14 = arith.constant 0 : index
    %8 = vector.load %arg2[%c0_12, %c0_13, %c0_14] : memref<1x1x256xf32, #tpu.memory_space<vmem>>, vector<1x1x256xf32>
    %9 = vector.shape_cast %8 : vector<1x1x256xf32> to vector<1x256xf32>
    %10 = vector.broadcast %9 : vector<1x256xf32> to vector<4x256xf32>
    %11 = arith.mulf %7, %10 : vector<4x256xf32>
    %cst = arith.constant dense<0.000000e+00> : vector<8x256xf32>
    %12 = tpu.matmul %3, %11, %cst {dimension_numbers = #tpu.dot_dimension_numbers<[1], [0], [0], [1], [0, 0, 1, 1], [], []>} : vector<8x4xf32>, vector<4x256xf32>, vector<8x256xf32> -> vector<8x256xf32>
    %13 = vector.broadcast %5 : vector<8x1xf32> to vector<8x256xf32>
    %14 = arith.addf %12, %13 : vector<8x256xf32>
    %c1 = arith.constant 1 : index
    %c0_15 = arith.constant 0 : index
    %c0_16 = arith.constant 0 : index
    %15 = vector.load %arg5[%c1, %c0_15, %c0_16] : memref<2x8x4xf32, #tpu.memory_space<vmem>>, vector<1x8x4xf32>
    %16 = vector.shape_cast %15 : vector<1x8x4xf32> to vector<8x4xf32>
    %c1_17 = arith.constant 1 : index
    %c0_18 = arith.constant 0 : index
    %c0_19 = arith.constant 0 : index
    %17 = vector.load %arg6[%c1_17, %c0_18, %c0_19] : memref<2x8x1xf32, #tpu.memory_space<vmem>>, vector<1x8x1xf32>
    %18 = vector.shape_cast %17 : vector<1x8x1xf32> to vector<8x1xf32>
    %c0_20 = arith.constant 0 : index
    %c0_21 = arith.constant 0 : index
    %c0_22 = arith.constant 0 : index
    %19 = vector.load %arg3[%c0_20, %c0_21, %c0_22] : memref<1x4x192xf32, #tpu.memory_space<vmem>>, vector<1x4x192xf32>
    %20 = vector.shape_cast %19 : vector<1x4x192xf32> to vector<4x192xf32>
    %c0_23 = arith.constant 0 : index
    %c0_24 = arith.constant 0 : index
    %c0_25 = arith.constant 0 : index
    %21 = vector.load %arg4[%c0_23, %c0_24, %c0_25] : memref<1x1x192xf32, #tpu.memory_space<vmem>>, vector<1x1x192xf32>
    %22 = vector.shape_cast %21 : vector<1x1x192xf32> to vector<1x192xf32>
    %23 = vector.broadcast %22 : vector<1x192xf32> to vector<4x192xf32>
    %24 = arith.mulf %20, %23 : vector<4x192xf32>
    %cst_26 = arith.constant dense<0.000000e+00> : vector<8x192xf32>
    %25 = tpu.matmul %16, %24, %cst_26 {dimension_numbers = #tpu.dot_dimension_numbers<[1], [0], [0], [1], [0, 0, 1, 1], [], []>} : vector<8x4xf32>, vector<4x192xf32>, vector<8x192xf32> -> vector<8x192xf32>
    %26 = vector.broadcast %18 : vector<8x1xf32> to vector<8x192xf32>
    %27 = arith.addf %25, %26 : vector<8x192xf32>
    %28 = vector.extract_strided_slice %14 {offsets = [0, 128], sizes = [8, 64], strides = [1, 1]} : vector<8x256xf32> to vector<8x64xf32>
    %29 = vector.extract_strided_slice %0 {offsets = [0, 0], sizes = [16, 8], strides = [1, 1]} : vector<48x8xf32> to vector<16x8xf32>
    %30 = vector.extract_strided_slice %1 {offsets = [0, 0], sizes = [16, 1], strides = [1, 1]} : vector<48x1xf32> to vector<16x1xf32>
    %cst_27 = arith.constant dense<0.000000e+00> : vector<16x64xf32>
    %31 = tpu.matmul %29, %28, %cst_27 {dimension_numbers = #tpu.dot_dimension_numbers<[1], [0], [0], [1], [0, 0, 1, 1], [], []>} : vector<16x8xf32>, vector<8x64xf32>, vector<16x64xf32> -> vector<16x64xf32>
    %32 = vector.broadcast %30 : vector<16x1xf32> to vector<16x64xf32>
    %33 = arith.addf %31, %32 : vector<16x64xf32>
    %34 = vector.extract_strided_slice %0 {offsets = [16, 0], sizes = [16, 8], strides = [1, 1]} : vector<48x8xf32> to vector<16x8xf32>
    %35 = vector.extract_strided_slice %1 {offsets = [16, 0], sizes = [16, 1], strides = [1, 1]} : vector<48x1xf32> to vector<16x1xf32>
    %cst_28 = arith.constant dense<0.000000e+00> : vector<16x192xf32>
    %36 = tpu.matmul %34, %27, %cst_28 {dimension_numbers = #tpu.dot_dimension_numbers<[1], [0], [0], [1], [0, 0, 1, 1], [], []>} : vector<16x8xf32>, vector<8x192xf32>, vector<16x192xf32> -> vector<16x192xf32>
    %37 = vector.broadcast %35 : vector<16x1xf32> to vector<16x192xf32>
    %38 = arith.addf %36, %37 : vector<16x192xf32>
    %39 = vector.extract_strided_slice %0 {offsets = [32, 0], sizes = [16, 8], strides = [1, 1]} : vector<48x8xf32> to vector<16x8xf32>
    %40 = vector.extract_strided_slice %1 {offsets = [32, 0], sizes = [16, 1], strides = [1, 1]} : vector<48x1xf32> to vector<16x1xf32>
    %cst_29 = arith.constant dense<0.000000e+00> : vector<16x256xf32>
    %41 = tpu.matmul %39, %14, %cst_29 {dimension_numbers = #tpu.dot_dimension_numbers<[1], [0], [0], [1], [0, 0, 1, 1], [], []>} : vector<16x8xf32>, vector<8x256xf32>, vector<16x256xf32> -> vector<16x256xf32>
    %42 = vector.broadcast %40 : vector<16x1xf32> to vector<16x256xf32>
    %43 = arith.addf %41, %42 : vector<16x256xf32>
    %44 = vector.extract_strided_slice %33 {offsets = [0, 0], sizes = [8, 64], strides = [1, 1]} : vector<16x64xf32> to vector<8x64xf32>
    %45 = vector.extract_strided_slice %38 {offsets = [0, 0], sizes = [8, 192], strides = [1, 1]} : vector<16x192xf32> to vector<8x192xf32>
    %46 = vector.extract_strided_slice %38 {offsets = [8, 0], sizes = [8, 192], strides = [1, 1]} : vector<16x192xf32> to vector<8x192xf32>
    %47 = vector.extract_strided_slice %45 {offsets = [0, 0], sizes = [8, 64], strides = [1, 1]} : vector<8x192xf32> to vector<8x64xf32>
    %48 = arith.mulf %44, %47 : vector<8x64xf32>
    %cst_30 = arith.constant dense<0.000000e+00> : vector<8xf32>
    %49 = vector.multi_reduction <add>, %48, %cst_30 [1] : vector<8x64xf32> to vector<8xf32>
    %50 = vector.shape_cast %49 : vector<8xf32> to vector<8x1xf32>
    %cst_31 = arith.constant dense<0.000000e+00> : vector<1xf32>
    %51 = vector.multi_reduction <add>, %50, %cst_31 [0] : vector<8x1xf32> to vector<1xf32>
    %52 = vector.shape_cast %51 : vector<1xf32> to vector<1x1xf32>
    %53 = vector.extract_strided_slice %45 {offsets = [0, 64], sizes = [8, 64], strides = [1, 1]} : vector<8x192xf32> to vector<8x64xf32>
    %54 = arith.mulf %44, %53 : vector<8x64xf32>
    %cst_32 = arith.constant dense<0.000000e+00> : vector<8xf32>
    %55 = vector.multi_reduction <add>, %54, %cst_32 [1] : vector<8x64xf32> to vector<8xf32>
    %56 = vector.shape_cast %55 : vector<8xf32> to vector<8x1xf32>
    %cst_33 = arith.constant dense<0.000000e+00> : vector<1xf32>
    %57 = vector.multi_reduction <add>, %56, %cst_33 [0] : vector<8x1xf32> to vector<1xf32>
    %58 = vector.shape_cast %57 : vector<1xf32> to vector<1x1xf32>
    %59 = vector.extract_strided_slice %45 {offsets = [0, 128], sizes = [8, 64], strides = [1, 1]} : vector<8x192xf32> to vector<8x64xf32>
    %60 = arith.mulf %44, %59 : vector<8x64xf32>
    %cst_34 = arith.constant dense<0.000000e+00> : vector<8xf32>
    %61 = vector.multi_reduction <add>, %60, %cst_34 [1] : vector<8x64xf32> to vector<8xf32>
    %62 = vector.shape_cast %61 : vector<8xf32> to vector<8x1xf32>
    %cst_35 = arith.constant dense<0.000000e+00> : vector<1xf32>
    %63 = vector.multi_reduction <add>, %62, %cst_35 [0] : vector<8x1xf32> to vector<1xf32>
    %64 = vector.shape_cast %63 : vector<1xf32> to vector<1x1xf32>
    %65 = tpu.concatenate %52, %58, %64 in 1 : vector<1x1xf32>, vector<1x1xf32>, vector<1x1xf32> -> vector<1x3xf32>
    %cst_36 = arith.constant dense<0xFF800000> : vector<1xf32>
    %66 = vector.multi_reduction <maximumf>, %65, %cst_36 [1] : vector<1x3xf32> to vector<1xf32>
    %67 = vector.shape_cast %66 : vector<1xf32> to vector<1x1xf32>
    %68 = vector.broadcast %67 : vector<1x1xf32> to vector<1x3xf32>
    %69 = arith.subf %65, %68 : vector<1x3xf32>
    %70 = math.exp %69 : vector<1x3xf32>
    %cst_37 = arith.constant dense<0.000000e+00> : vector<1xf32>
    %71 = vector.multi_reduction <add>, %70, %cst_37 [1] : vector<1x3xf32> to vector<1xf32>
    %72 = vector.shape_cast %71 : vector<1xf32> to vector<1x1xf32>
    %73 = vector.broadcast %72 : vector<1x1xf32> to vector<1x3xf32>
    %74 = arith.divf %70, %73 : vector<1x3xf32>
    %cst_38 = arith.constant 0.000000e+00 : f32
    %75 = vector.broadcast %cst_38 : f32 to vector<8x64xf32>
    %76 = vector.extract_strided_slice %74 {offsets = [0, 0], sizes = [1, 1], strides = [1, 1]} : vector<1x3xf32> to vector<1x1xf32>
    %77 = vector.extract_strided_slice %46 {offsets = [0, 0], sizes = [8, 64], strides = [1, 1]} : vector<8x192xf32> to vector<8x64xf32>
    %78 = vector.broadcast %76 : vector<1x1xf32> to vector<8x64xf32>
    %79 = arith.mulf %78, %77 : vector<8x64xf32>
    %80 = arith.addf %75, %79 : vector<8x64xf32>
    %81 = vector.extract_strided_slice %74 {offsets = [0, 1], sizes = [1, 1], strides = [1, 1]} : vector<1x3xf32> to vector<1x1xf32>
    %82 = vector.extract_strided_slice %46 {offsets = [0, 64], sizes = [8, 64], strides = [1, 1]} : vector<8x192xf32> to vector<8x64xf32>
    %83 = vector.broadcast %81 : vector<1x1xf32> to vector<8x64xf32>
    %84 = arith.mulf %83, %82 : vector<8x64xf32>
    %85 = arith.addf %80, %84 : vector<8x64xf32>
    %86 = vector.extract_strided_slice %74 {offsets = [0, 2], sizes = [1, 1], strides = [1, 1]} : vector<1x3xf32> to vector<1x1xf32>
    %87 = vector.extract_strided_slice %46 {offsets = [0, 128], sizes = [8, 64], strides = [1, 1]} : vector<8x192xf32> to vector<8x64xf32>
    %88 = vector.broadcast %86 : vector<1x1xf32> to vector<8x64xf32>
    %89 = arith.mulf %88, %87 : vector<8x64xf32>
    %90 = arith.addf %85, %89 : vector<8x64xf32>
    %91 = arith.addf %28, %90 : vector<8x64xf32>
    %92 = vector.extract_strided_slice %33 {offsets = [8, 0], sizes = [8, 64], strides = [1, 1]} : vector<16x64xf32> to vector<8x64xf32>
    %93 = vector.extract_strided_slice %43 {offsets = [0, 0], sizes = [8, 256], strides = [1, 1]} : vector<16x256xf32> to vector<8x256xf32>
    %94 = vector.extract_strided_slice %43 {offsets = [8, 0], sizes = [8, 256], strides = [1, 1]} : vector<16x256xf32> to vector<8x256xf32>
    %95 = vector.extract_strided_slice %93 {offsets = [0, 0], sizes = [8, 64], strides = [1, 1]} : vector<8x256xf32> to vector<8x64xf32>
    %96 = arith.mulf %92, %95 : vector<8x64xf32>
    %cst_39 = arith.constant dense<0.000000e+00> : vector<8xf32>
    %97 = vector.multi_reduction <add>, %96, %cst_39 [1] : vector<8x64xf32> to vector<8xf32>
    %98 = vector.shape_cast %97 : vector<8xf32> to vector<8x1xf32>
    %cst_40 = arith.constant dense<0.000000e+00> : vector<1xf32>
    %99 = vector.multi_reduction <add>, %98, %cst_40 [0] : vector<8x1xf32> to vector<1xf32>
    %100 = vector.shape_cast %99 : vector<1xf32> to vector<1x1xf32>
    %101 = vector.extract_strided_slice %93 {offsets = [0, 64], sizes = [8, 64], strides = [1, 1]} : vector<8x256xf32> to vector<8x64xf32>
    %102 = arith.mulf %92, %101 : vector<8x64xf32>
    %cst_41 = arith.constant dense<0.000000e+00> : vector<8xf32>
    %103 = vector.multi_reduction <add>, %102, %cst_41 [1] : vector<8x64xf32> to vector<8xf32>
    %104 = vector.shape_cast %103 : vector<8xf32> to vector<8x1xf32>
    %cst_42 = arith.constant dense<0.000000e+00> : vector<1xf32>
    %105 = vector.multi_reduction <add>, %104, %cst_42 [0] : vector<8x1xf32> to vector<1xf32>
    %106 = vector.shape_cast %105 : vector<1xf32> to vector<1x1xf32>
    %107 = vector.extract_strided_slice %93 {offsets = [0, 128], sizes = [8, 64], strides = [1, 1]} : vector<8x256xf32> to vector<8x64xf32>
    %108 = arith.mulf %92, %107 : vector<8x64xf32>
    %cst_43 = arith.constant dense<0.000000e+00> : vector<8xf32>
    %109 = vector.multi_reduction <add>, %108, %cst_43 [1] : vector<8x64xf32> to vector<8xf32>
    %110 = vector.shape_cast %109 : vector<8xf32> to vector<8x1xf32>
    %cst_44 = arith.constant dense<0.000000e+00> : vector<1xf32>
    %111 = vector.multi_reduction <add>, %110, %cst_44 [0] : vector<8x1xf32> to vector<1xf32>
    %112 = vector.shape_cast %111 : vector<1xf32> to vector<1x1xf32>
    %113 = vector.extract_strided_slice %93 {offsets = [0, 192], sizes = [8, 64], strides = [1, 1]} : vector<8x256xf32> to vector<8x64xf32>
    %114 = arith.mulf %92, %113 : vector<8x64xf32>
    %cst_45 = arith.constant dense<0.000000e+00> : vector<8xf32>
    %115 = vector.multi_reduction <add>, %114, %cst_45 [1] : vector<8x64xf32> to vector<8xf32>
    %116 = vector.shape_cast %115 : vector<8xf32> to vector<8x1xf32>
    %cst_46 = arith.constant dense<0.000000e+00> : vector<1xf32>
    %117 = vector.multi_reduction <add>, %116, %cst_46 [0] : vector<8x1xf32> to vector<1xf32>
    %118 = vector.shape_cast %117 : vector<1xf32> to vector<1x1xf32>
    %119 = tpu.concatenate %100, %106, %112, %118 in 1 : vector<1x1xf32>, vector<1x1xf32>, vector<1x1xf32>, vector<1x1xf32> -> vector<1x4xf32>
    %cst_47 = arith.constant dense<0xFF800000> : vector<1xf32>
    %120 = vector.multi_reduction <maximumf>, %119, %cst_47 [1] : vector<1x4xf32> to vector<1xf32>
    %121 = vector.shape_cast %120 : vector<1xf32> to vector<1x1xf32>
    %122 = vector.broadcast %121 : vector<1x1xf32> to vector<1x4xf32>
    %123 = arith.subf %119, %122 : vector<1x4xf32>
    %124 = math.exp %123 : vector<1x4xf32>
    %cst_48 = arith.constant dense<0.000000e+00> : vector<1xf32>
    %125 = vector.multi_reduction <add>, %124, %cst_48 [1] : vector<1x4xf32> to vector<1xf32>
    %126 = vector.shape_cast %125 : vector<1xf32> to vector<1x1xf32>
    %127 = vector.broadcast %126 : vector<1x1xf32> to vector<1x4xf32>
    %128 = arith.divf %124, %127 : vector<1x4xf32>
    %cst_49 = arith.constant 0.000000e+00 : f32
    %129 = vector.broadcast %cst_49 : f32 to vector<8x64xf32>
    %130 = vector.extract_strided_slice %128 {offsets = [0, 0], sizes = [1, 1], strides = [1, 1]} : vector<1x4xf32> to vector<1x1xf32>
    %131 = vector.extract_strided_slice %94 {offsets = [0, 0], sizes = [8, 64], strides = [1, 1]} : vector<8x256xf32> to vector<8x64xf32>
    %132 = vector.broadcast %130 : vector<1x1xf32> to vector<8x64xf32>
    %133 = arith.mulf %132, %131 : vector<8x64xf32>
    %134 = arith.addf %129, %133 : vector<8x64xf32>
    %135 = vector.extract_strided_slice %128 {offsets = [0, 1], sizes = [1, 1], strides = [1, 1]} : vector<1x4xf32> to vector<1x1xf32>
    %136 = vector.extract_strided_slice %94 {offsets = [0, 64], sizes = [8, 64], strides = [1, 1]} : vector<8x256xf32> to vector<8x64xf32>
    %137 = vector.broadcast %135 : vector<1x1xf32> to vector<8x64xf32>
    %138 = arith.mulf %137, %136 : vector<8x64xf32>
    %139 = arith.addf %134, %138 : vector<8x64xf32>
    %140 = vector.extract_strided_slice %128 {offsets = [0, 2], sizes = [1, 1], strides = [1, 1]} : vector<1x4xf32> to vector<1x1xf32>
    %141 = vector.extract_strided_slice %94 {offsets = [0, 128], sizes = [8, 64], strides = [1, 1]} : vector<8x256xf32> to vector<8x64xf32>
    %142 = vector.broadcast %140 : vector<1x1xf32> to vector<8x64xf32>
    %143 = arith.mulf %142, %141 : vector<8x64xf32>
    %144 = arith.addf %139, %143 : vector<8x64xf32>
    %145 = vector.extract_strided_slice %128 {offsets = [0, 3], sizes = [1, 1], strides = [1, 1]} : vector<1x4xf32> to vector<1x1xf32>
    %146 = vector.extract_strided_slice %94 {offsets = [0, 192], sizes = [8, 64], strides = [1, 1]} : vector<8x256xf32> to vector<8x64xf32>
    %147 = vector.broadcast %145 : vector<1x1xf32> to vector<8x64xf32>
    %148 = arith.mulf %147, %146 : vector<8x64xf32>
    %149 = arith.addf %144, %148 : vector<8x64xf32>
    %150 = arith.addf %28, %149 : vector<8x64xf32>
    %151 = vector.extract_strided_slice %14 {offsets = [0, 0], sizes = [8, 64], strides = [1, 1]} : vector<8x256xf32> to vector<8x64xf32>
    %152 = arith.addf %151, %91 : vector<8x64xf32>
    %153 = arith.addf %151, %150 : vector<8x64xf32>
    %154 = vector.extract_strided_slice %14 {offsets = [0, 64], sizes = [8, 64], strides = [1, 1]} : vector<8x256xf32> to vector<8x64xf32>
    %155 = arith.addf %154, %91 : vector<8x64xf32>
    %156 = arith.addf %154, %150 : vector<8x64xf32>
    %157 = vector.extract_strided_slice %14 {offsets = [0, 128], sizes = [8, 64], strides = [1, 1]} : vector<8x256xf32> to vector<8x64xf32>
    %158 = arith.addf %157, %91 : vector<8x64xf32>
    %159 = arith.addf %157, %150 : vector<8x64xf32>
    %160 = vector.extract_strided_slice %14 {offsets = [0, 192], sizes = [8, 64], strides = [1, 1]} : vector<8x256xf32> to vector<8x64xf32>
    %161 = arith.addf %160, %91 : vector<8x64xf32>
    %162 = arith.addf %160, %150 : vector<8x64xf32>
    %163 = tpu.concatenate %152, %153, %155, %156, %158, %159, %161, %162 in 0 : vector<8x64xf32>, vector<8x64xf32>, vector<8x64xf32>, vector<8x64xf32>, vector<8x64xf32>, vector<8x64xf32>, vector<8x64xf32>, vector<8x64xf32> -> vector<64x64xf32>
    %c0_50 = arith.constant 0 : index
    %c0_51 = arith.constant 0 : index
    %c0_52 = arith.constant 0 : index
    %164 = vector.load %arg9[%c0_50, %c0_51, %c0_52] : memref<1x64x64xf32, #tpu.memory_space<vmem>>, vector<1x64x64xf32>
    %165 = vector.shape_cast %164 : vector<1x64x64xf32> to vector<64x64xf32>
    %166 = vector.shape_cast %163 : vector<64x64xf32> to vector<1x64x64xf32>
    tpu.vector_store %arg9[%c0_50, %c0_51, %c0_52], %166 {strides = array<i32>} : memref<1x64x64xf32, #tpu.memory_space<vmem>>, vector<1x64x64xf32>,
    return
  }
  func.func @transform_0(%arg0: i32) -> (i32, i32, i32) {
    %c0_i32 = arith.constant 0 : i32
    %c0_i32_0 = arith.constant 0 : i32
    %c0_i32_1 = arith.constant 0 : i32
    return %arg0, %c0_i32, %c0_i32_0 : i32, i32, i32
  }
  func.func @transform_1(%arg0: i32) -> (i32, i32, i32) {
    %c0_i32 = arith.constant 0 : i32
    %c0_i32_0 = arith.constant 0 : i32
    %c0_i32_1 = arith.constant 0 : i32
    return %arg0, %c0_i32, %c0_i32_0 : i32, i32, i32
  }
  func.func @transform_2(%arg0: i32) -> (i32, i32, i32) {
    %c0_i32 = arith.constant 0 : i32
    %c0_i32_0 = arith.constant 0 : i32
    %c0_i32_1 = arith.constant 0 : i32
    return %arg0, %c0_i32, %c0_i32_0 : i32, i32, i32
  }
  func.func @transform_3(%arg0: i32) -> (i32, i32, i32) {
    %c0_i32 = arith.constant 0 : i32
    %c0_i32_0 = arith.constant 0 : i32
    %c0_i32_1 = arith.constant 0 : i32
    return %arg0, %c0_i32, %c0_i32_0 : i32, i32, i32
  }
  func.func @transform_4(%arg0: i32) -> (i32, i32, i32) {
    %c0_i32 = arith.constant 0 : i32
    %c0_i32_0 = arith.constant 0 : i32
    %c0_i32_1 = arith.constant 0 : i32
    %c0_i32_2 = arith.constant 0 : i32
    return %c0_i32, %c0_i32_0, %c0_i32_1 : i32, i32, i32
  }
  func.func @transform_5(%arg0: i32) -> (i32, i32, i32) {
    %c0_i32 = arith.constant 0 : i32
    %c0_i32_0 = arith.constant 0 : i32
    %c0_i32_1 = arith.constant 0 : i32
    %c0_i32_2 = arith.constant 0 : i32
    return %c0_i32, %c0_i32_0, %c0_i32_1 : i32, i32, i32
  }
  func.func @transform_6(%arg0: i32) -> (i32, i32) {
    %c0_i32 = arith.constant 0 : i32
    %c0_i32_0 = arith.constant 0 : i32
    %c0_i32_1 = arith.constant 0 : i32
    return %c0_i32, %c0_i32_0 : i32, i32
  }
  func.func @transform_7(%arg0: i32) -> (i32, i32) {
    %c0_i32 = arith.constant 0 : i32
    %c0_i32_0 = arith.constant 0 : i32
    %c0_i32_1 = arith.constant 0 : i32
    return %c0_i32, %c0_i32_0 : i32, i32
  }
  func.func @transform_8(%arg0: i32) -> (i32, i32, i32) {
    %c0_i32 = arith.constant 0 : i32
    %c0_i32_0 = arith.constant 0 : i32
    %c0_i32_1 = arith.constant 0 : i32
    return %arg0, %c0_i32, %c0_i32_0 : i32, i32, i32
  }
}

</mosaic_0001>

<llo_original>
// kernel: _lambda_.1
$region0: #{_lambda_.1}
  #allocation0 [shape = 'u32[]', space=smem, size = 0x4, offset = 0x4, fixed_abs, tag = 'smem constant byte address 0x4 - core index']
  #allocation1 [shape = 'u32[144,128]{1,0:T(1,128)}', space=vmem, size = 0x12000, scoped, tag = 'internal scratch']
  %s0 = inlined_call_operand.vmem [shape: f32[2,4,256], index: 0, kind: input, shape index: {}]
  %s1 = inlined_call_operand.vmem [shape: f32[2,1,256], index: 1, kind: input, shape index: {}]
  %s2 = inlined_call_operand.vmem [shape: f32[2,4,192], index: 2, kind: input, shape index: {}]
  %s3 = inlined_call_operand.vmem [shape: f32[2,1,192], index: 3, kind: input, shape index: {}]
  %s4 = inlined_call_operand.vmem [shape: f32[2,8,4], index: 4, kind: input, shape index: {}]
  %s5 = inlined_call_operand.vmem [shape: f32[2,8,1], index: 5, kind: input, shape index: {}]
  %s6 = inlined_call_operand.vmem [shape: f32[48,8], index: 6, kind: input, shape index: {}]
  %s7 = inlined_call_operand.vmem [shape: f32[48,1], index: 7, kind: input, shape index: {}]
  %s8 = inlined_call_operand.vmem [shape: f32[2,64,64], index: 8, kind: output, shape index: {}]
  %s9 = sld [smem:[#allocation0]]
  $region65: #{_lambda_.1} parent=0
    _
  %s11 = ssub.s32 1, %s9
  %s12 = scalar_select 0, %s11, %s9
  loop: start=0, step=1, limit=4
  $region2: #{_lambda_.1} parent=0 // loop_pre_header
    _
  $region3: #{_lambda_.1} parent=0 // loop_header
    %s14 = sphi 0, %s18
    %p15 = scmp.ge.s32.totalorder %s14, 4
    %s24 = sphi 0, %s26
    %s27 = sphi 0, %s24
    %s28 = sphi 0, %s27
    %s44 = sphi 0, %s28
    %s50 = sphi 0, %s52
    %s53 = sphi 0, %s50
    %s54 = sphi 0, %s53
    %s70 = sphi 0, %s54
    %s76 = sphi 0, %s78
    %s79 = sphi 0, %s76
    %s80 = sphi 0, %s79
    %s96 = sphi 0, %s80
    %s102 = sphi 0, %s104
    %s105 = sphi 0, %s102
    %s106 = sphi 0, %s105
    %s122 = sphi 0, %s106
    %s126 = sphi 0, %s126
    %s128 = sphi 0, %s126
    %s129 = sphi 0, %s128
    %s143 = sphi 0, %s129
    %s147 = sphi 0, %s147
    %s149 = sphi 0, %s147
    %s150 = sphi 0, %s149
    %s164 = sphi 0, %s150
    %s168 = sphi 0, %s168
    %s170 = sphi 0, %s168
    %s171 = sphi 0, %s170
    %s185 = sphi 0, %s171
    %s189 = sphi 0, %s189
    %s191 = sphi 0, %s189
    %s192 = sphi 0, %s191
    %s206 = sphi 0, %s192
    %s212 = sphi 0, %s214
    %s215 = sphi 0, %s212
    %s216 = sphi 0, %s215
    %s232 = sphi 0, %s216
  $region4: #{_lambda_.1} parent=0 // loop_header_branch
    %17 = sbr.rel (%p15) target = $region8
  $region5: #{_lambda_.1} parent=0 // loop_body
    %s19 = ssub.s32 %s14, 1
    %s20 = ssub.s32 %s14, 2
    %s21 = sadd.s32 %s14, 1
    %s22 = ssub.s32 %s14, %s21
    %p23 = scmp.eq.s32.totalorder %s22, 0
    %s25 = sadd.s32 %s24, 1
    %s26 = scalar_select %p23, %s24, %s25
    %p29 = pneg %p23
    %p30 = scmp.eq.s32.totalorder %s14, 1
    %p31 = por %p29, %p30
    %p32 = scmp.ne.s32.totalorder %s24, %s27
    %p33 = scmp.eq.s32.totalorder %s14, 0
    %p34 = por %p32, %p33
    %p35 = scmp.ne.s32.totalorder %s24, %s27
    %p36 = scmp.eq.s32.totalorder %s19, 1
    %p37 = por %p35, %p36
    %p38 = scmp.ne.s32.totalorder %s27, %s28
    %p39 = scmp.eq.s32.totalorder %s19, 0
    %p40 = por %p38, %p39
    %p41 = scmp.ne.s32.totalorder %s27, %s28
    %p42 = scmp.eq.s32.totalorder %s20, 1
    %p43 = por %p41, %p42
    %p45 = scmp.ne.s32.totalorder %s28, %s44
    %p46 = scmp.eq.s32.totalorder %s20, 0
    %p47 = por %p45, %p46
    %s48 = ssub.s32 %s14, %s21
    %p49 = scmp.eq.s32.totalorder %s48, 0
    %s51 = sadd.s32 %s50, 1
    %s52 = scalar_select %p49, %s50, %s51
    %p55 = pneg %p49
    %p56 = scmp.eq.s32.totalorder %s14, 1
    %p57 = por %p55, %p56
    %p58 = scmp.ne.s32.totalorder %s50, %s53
    %p59 = scmp.eq.s32.totalorder %s14, 0
    %p60 = por %p58, %p59
    %p61 = scmp.ne.s32.totalorder %s50, %s53
    %p62 = scmp.eq.s32.totalorder %s19, 1
    %p63 = por %p61, %p62
    %p64 = scmp.ne.s32.totalorder %s53, %s54
    %p65 = scmp.eq.s32.totalorder %s19, 0
    %p66 = por %p64, %p65
    %p67 = scmp.ne.s32.totalorder %s53, %s54
    %p68 = scmp.eq.s32.totalorder %s20, 1
    %p69 = por %p67, %p68
    %p71 = scmp.ne.s32.totalorder %s54, %s70
    %p72 = scmp.eq.s32.totalorder %s20, 0
    %p73 = por %p71, %p72
    %s74 = ssub.s32 %s14, %s21
    %p75 = scmp.eq.s32.totalorder %s74, 0
    %s77 = sadd.s32 %s76, 1
    %s78 = scalar_select %p75, %s76, %s77
    %p81 = pneg %p75
    %p82 = scmp.eq.s32.totalorder %s14, 1
    %p83 = por %p81, %p82
    %p84 = scmp.ne.s32.totalorder %s76, %s79
    %p85 = scmp.eq.s32.totalorder %s14, 0
    %p86 = por %p84, %p85
    %p87 = scmp.ne.s32.totalorder %s76, %s79
    %p88 = scmp.eq.s32.totalorder %s19, 1
    %p89 = por %p87, %p88
    %p90 = scmp.ne.s32.totalorder %s79, %s80
    %p91 = scmp.eq.s32.totalorder %s19, 0
    %p92 = por %p90, %p91
    %p93 = scmp.ne.s32.totalorder %s79, %s80
    %p94 = scmp.eq.s32.totalorder %s20, 1
    %p95 = por %p93, %p94
    %p97 = scmp.ne.s32.totalorder %s80, %s96
    %p98 = scmp.eq.s32.totalorder %s20, 0
    %p99 = por %p97, %p98
    %s100 = ssub.s32 %s14, %s21
    %p101 = scmp.eq.s32.totalorder %s100, 0
    %s103 = sadd.s32 %s102, 1
    %s104 = scalar_select %p101, %s102, %s103
    %p107 = pneg %p101
    %p108 = scmp.eq.s32.totalorder %s14, 1
    %p109 = por %p107, %p108
    %p110 = scmp.ne.s32.totalorder %s102, %s105
    %p111 = scmp.eq.s32.totalorder %s14, 0
    %p112 = por %p110, %p111
    %p113 = scmp.ne.s32.totalorder %s102, %s105
    %p114 = scmp.eq.s32.totalorder %s19, 1
    %p115 = por %p113, %p114
    %p116 = scmp.ne.s32.totalorder %s105, %s106
    %p117 = scmp.eq.s32.totalorder %s19, 0
    %p118 = por %p116, %p117
    %p119 = scmp.ne.s32.totalorder %s105, %s106
    %p120 = scmp.eq.s32.totalorder %s20, 1
    %p121 = por %p119, %p120
    %p123 = scmp.ne.s32.totalorder %s106, %s122
    %p124 = scmp.eq.s32.totalorder %s20, 0
    %p125 = por %p123, %p124
    %s127 = sadd.s32 %s126, 1
    %p130 = scmp.eq.s32.totalorder %s14, 1
    %p131 = scmp.ne.s32.totalorder %s126, %s128
    %p132 = scmp.eq.s32.totalorder %s14, 0
    %p133 = por %p131, %p132
    %p134 = scmp.ne.s32.totalorder %s126, %s128
    %p135 = scmp.eq.s32.totalorder %s19, 1
    %p136 = por %p134, %p135
    %p137 = scmp.ne.s32.totalorder %s128, %s129
    %p138 = scmp.eq.s32.totalorder %s19, 0
    %p139 = por %p137, %p138
    %p140 = scmp.ne.s32.totalorder %s128, %s129
    %p141 = scmp.eq.s32.totalorder %s20, 1
    %p142 = por %p140, %p141
    %p144 = scmp.ne.s32.totalorder %s129, %s143
    %p145 = scmp.eq.s32.totalorder %s20, 0
    %p146 = por %p144, %p145
    %s148 = sadd.s32 %s147, 1
    %p151 = scmp.eq.s32.totalorder %s14, 1
    %p152 = scmp.ne.s32.totalorder %s147, %s149
    %p153 = scmp.eq.s32.totalorder %s14, 0
    %p154 = por %p152, %p153
    %p155 = scmp.ne.s32.totalorder %s147, %s149
    %p156 = scmp.eq.s32.totalorder %s19, 1
    %p157 = por %p155, %p156
    %p158 = scmp.ne.s32.totalorder %s149, %s150
    %p159 = scmp.eq.s32.totalorder %s19, 0
    %p160 = por %p158, %p159
    %p161 = scmp.ne.s32.totalorder %s149, %s150
    %p162 = scmp.eq.s32.totalorder %s20, 1
    %p163 = por %p161, %p162
    %p165 = scmp.ne.s32.totalorder %s150, %s164
    %p166 = scmp.eq.s32.totalorder %s20, 0
    %p167 = por %p165, %p166
    %s169 = sadd.s32 %s168, 1
    %p172 = scmp.eq.s32.totalorder %s14, 1
    %p173 = scmp.ne.s32.totalorder %s168, %s170
    %p174 = scmp.eq.s32.totalorder %s14, 0
    %p175 = por %p173, %p174
    %p176 = scmp.ne.s32.totalorder %s168, %s170
    %p177 = scmp.eq.s32.totalorder %s19, 1
    %p178 = por %p176, %p177
    %p179 = scmp.ne.s32.totalorder %s170, %s171
    %p180 = scmp.eq.s32.totalorder %s19, 0
    %p181 = por %p179, %p180
    %p182 = scmp.ne.s32.totalorder %s170, %s171
    %p183 = scmp.eq.s32.totalorder %s20, 1
    %p184 = por %p182, %p183
    %p186 = scmp.ne.s32.totalorder %s171, %s185
    %p187 = scmp.eq.s32.totalorder %s20, 0
    %p188 = por %p186, %p187
    %s190 = sadd.s32 %s189, 1
    %p193 = scmp.eq.s32.totalorder %s14, 1
    %p194 = scmp.ne.s32.totalorder %s189, %s191
    %p195 = scmp.eq.s32.totalorder %s14, 0
    %p196 = por %p194, %p195
    %p197 = scmp.ne.s32.totalorder %s189, %s191
    %p198 = scmp.eq.s32.totalorder %s19, 1
    %p199 = por %p197, %p198
    %p200 = scmp.ne.s32.totalorder %s191, %s192
    %p201 = scmp.eq.s32.totalorder %s19, 0
    %p202 = por %p200, %p201
    %p203 = scmp.ne.s32.totalorder %s191, %s192
    %p204 = scmp.eq.s32.totalorder %s20, 1
    %p205 = por %p203, %p204
    %p207 = scmp.ne.s32.totalorder %s192, %s206
    %p208 = scmp.eq.s32.totalorder %s20, 0
    %p209 = por %p207, %p208
    %s210 = ssub.s32 %s14, %s21
    %p211 = scmp.eq.s32.totalorder %s210, 0
    %s213 = sadd.s32 %s212, 1
    %s214 = scalar_select %p211, %s212, %s213
    %p217 = pneg %p211
    %p218 = scmp.eq.s32.totalorder %s14, 1
    %p219 = por %p217, %p218
    %p220 = scmp.ne.s32.totalorder %s212, %s215
    %p221 = scmp.eq.s32.totalorder %s14, 0
    %p222 = por %p220, %p221
    %p223 = scmp.ne.s32.totalorder %s212, %s215
    %p224 = scmp.eq.s32.totalorder %s19, 1
    %p225 = por %p223, %p224
    %p226 = scmp.ne.s32.totalorder %s215, %s216
    %p227 = scmp.eq.s32.totalorder %s19, 0
    %p228 = por %p226, %p227
    %p229 = scmp.ne.s32.totalorder %s215, %s216
    %p230 = scmp.eq.s32.totalorder %s20, 1
    %p231 = por %p229, %p230
    %p233 = scmp.ne.s32.totalorder %s216, %s232
    %p234 = scmp.eq.s32.totalorder %s20, 0
    %p235 = por %p233, %p234
    %p236 = scmp.le.s32.totalorder 1, %s14
    %p237 = scmp.lt.s32.totalorder %s14, 3
    %p238 = pnand %p236, %p237
    %p239 = pneg %p238
    // Predicated region
    $region9: #{_lambda_.1} parent=5 // pred_check
      _
    $region10: #{_lambda_.1} parent=5 // pred_check_branch
      %241 = sbr.rel (%p238) target = $region12
    $region11: #{_lambda_.1} parent=5 // pred_region
      %s242 = ssub.s32 %s14, 1
      // Predicated region
      $region13: #{_lambda_.1} parent=11 // pred_check
        %p243 = pneg %p139
      $region14: #{_lambda_.1} parent=11 // pred_check_branch
        %245 = sbr.rel (%p243) target = $region16
      $region15: #{_lambda_.1} parent=11 // pred_region
        _
      $region16: #{_lambda_.1} parent=11 // pred_fallthru
        _
      // Predicated region
      $region17: #{_lambda_.1} parent=11 // pred_check
        %p246 = pneg %p160
      $region18: #{_lambda_.1} parent=11 // pred_check_branch
        %248 = sbr.rel (%p246) target = $region20
      $region19: #{_lambda_.1} parent=11 // pred_region
        _
      $region20: #{_lambda_.1} parent=11 // pred_fallthru
        _
      // Predicated region
      $region21: #{_lambda_.1} parent=11 // pred_check
        %p249 = pneg %p181
      $region22: #{_lambda_.1} parent=11 // pred_check_branch
        %251 = sbr.rel (%p249) target = $region24
      $region23: #{_lambda_.1} parent=11 // pred_region
        _
      $region24: #{_lambda_.1} parent=11 // pred_fallthru
        _
      // Predicated region
      $region25: #{_lambda_.1} parent=11 // pred_check
        %p252 = pneg %p202
      $region26: #{_lambda_.1} parent=11 // pred_check_branch
        %254 = sbr.rel (%p252) target = $region28
      $region27: #{_lambda_.1} parent=11 // pred_region
        _
      $region28: #{_lambda_.1} parent=11 // pred_fallthru
        _
    $region12: #{_lambda_.1} parent=5 // pred_fallthru
      _
    %p255 = scmp.lt.s32.totalorder %s14, 2
    // Predicated region
    $region29: #{_lambda_.1} parent=5 // pred_check
      %p256 = pneg %p255
    $region30: #{_lambda_.1} parent=5 // pred_check_branch
      %258 = sbr.rel (%p256) target = $region32
    $region31: #{_lambda_.1} parent=5 // pred_region
      // Predicated region
      $region33: #{_lambda_.1} parent=31 // pred_check
        %p259 = pneg %p34
      $region34: #{_lambda_.1} parent=31 // pred_check_branch
        %261 = sbr.rel (%p259) target = $region36
      $region35: #{_lambda_.1} parent=31 // pred_region
        %p262 = scmp.lt.s32.totalorder %s14, 1
        %s263 = scalar_select %p262, %s14, 1
        %s264 = smul.addr %s263, 2
        %s265 = smul.addr %s264, 4
        %s266 = scalar_lea.vmem %s0, %s265
      $region36: #{_lambda_.1} parent=31 // pred_fallthru
        _
      // Predicated region
      $region37: #{_lambda_.1} parent=31 // pred_check
        %p267 = pneg %p60
      $region38: #{_lambda_.1} parent=31 // pred_check_branch
        %269 = sbr.rel (%p267) target = $region40
      $region39: #{_lambda_.1} parent=31 // pred_region
        %p270 = scmp.lt.s32.totalorder %s14, 1
        %s271 = scalar_select %p270, %s14, 1
        %s272 = smul.addr %s271, 2
        %s273 = scalar_lea.vmem %s1, %s272
      $region40: #{_lambda_.1} parent=31 // pred_fallthru
        _
      // Predicated region
      $region41: #{_lambda_.1} parent=31 // pred_check
        %p274 = pneg %p86
      $region42: #{_lambda_.1} parent=31 // pred_check_branch
        %276 = sbr.rel (%p274) target = $region44
      $region43: #{_lambda_.1} parent=31 // pred_region
        %p277 = scmp.lt.s32.totalorder %s14, 1
        %s278 = scalar_select %p277, %s14, 1
        %s279 = smul.addr %s278, 2
        %s280 = smul.addr %s279, 4
        %s281 = scalar_lea.vmem %s2, %s280
      $region44: #{_lambda_.1} parent=31 // pred_fallthru
        _
      // Predicated region
      $region45: #{_lambda_.1} parent=31 // pred_check
        %p282 = pneg %p112
      $region46: #{_lambda_.1} parent=31 // pred_check_branch
        %284 = sbr.rel (%p282) target = $region48
      $region47: #{_lambda_.1} parent=31 // pred_region
        %p285 = scmp.lt.s32.totalorder %s14, 1
        %s286 = scalar_select %p285, %s14, 1
        %s287 = smul.addr %s286, 2
        %s288 = scalar_lea.vmem %s3, %s287
      $region48: #{_lambda_.1} parent=31 // pred_fallthru
        _
    $region32: #{_lambda_.1} parent=5 // pred_fallthru
      _
    %p289 = scmp.le.s32.totalorder 1, %s14
    %p290 = scmp.lt.s32.totalorder %s14, 3
    %p291 = pnand %p289, %p290
    %p292 = pneg %p291
    // Predicated region
    $region49: #{_lambda_.1} parent=5 // pred_check
      _
    $region50: #{_lambda_.1} parent=5 // pred_check_branch
      %294 = sbr.rel (%p291) target = $region52
    $region51: #{_lambda_.1} parent=5 // pred_region
      %s295 = ssub.s32 %s14, 1
      %p296 = scmp.lt.s32.totalorder %s19, 1
      %s297 = scalar_select %p296, %s19, 1
      %s298 = smul.addr %s297, 2
      %s299 = smul.addr %s298, 4
      %s300 = scalar_lea.vmem %s0, %s299
      %p301 = pneg %p40
      %p302 = pneg %p37
      %p303 = scmp.lt.s32.totalorder %s19, 1
      %s304 = scalar_select %p303, %s19, 1
      %s305 = smul.addr %s304, 2
      %s306 = scalar_lea.vmem %s1, %s305
      %p307 = pneg %p66
      %p308 = pneg %p63
      %p309 = scmp.lt.s32.totalorder %s19, 1
      %s310 = scalar_select %p309, %s19, 1
      %s311 = smul.addr %s310, 2
      %s312 = smul.addr %s311, 4
      %s313 = scalar_lea.vmem %s2, %s312
      %p314 = pneg %p92
      %p315 = pneg %p89
      %p316 = scmp.lt.s32.totalorder %s19, 1
      %s317 = scalar_select %p316, %s19, 1
      %s318 = smul.addr %s317, 2
      %s319 = scalar_lea.vmem %s3, %s318
      %p320 = pneg %p118
      %p321 = pneg %p115
      %p322 = pneg %p139
      %p323 = pneg %p136
      %p324 = pneg %p160
      %p325 = pneg %p157
      %p326 = pneg %p181
      %p327 = pneg %p178
      %p328 = pneg %p202
      %p329 = pneg %p199
      %p330 = pneg %p228
      %p331 = pneg %p225
      %p332 = scmp.lt.s32.totalorder %s19, 1
      %s333 = scalar_select %p332, %s19, 1
      %s334 = smul.addr %s333, 8
      %s335 = smul.addr %s334, 8
      %s336 = scalar_lea.vmem %s8, %s335
      %p337 = scmp.lt.s32.totalorder %s19, 1
      %s338 = scalar_select %p337, %s19, 1
      %s339 = smul.addr %s338, 2
      %s340 = smul.addr %s339, 4
      %s341 = scalar_lea.vmem %s0, %s340
      %p342 = scmp.lt.s32.totalorder %s19, 1
      %s343 = scalar_select %p342, %s19, 1
      %s344 = smul.addr %s343, 2
      %s345 = scalar_lea.vmem %s1, %s344
      %p346 = scmp.lt.s32.totalorder %s19, 1
      %s347 = scalar_select %p346, %s19, 1
      %s348 = smul.addr %s347, 2
      %s349 = smul.addr %s348, 4
      %s350 = scalar_lea.vmem %s2, %s349
      %p351 = scmp.lt.s32.totalorder %s19, 1
      %s352 = scalar_select %p351, %s19, 1
      %s353 = smul.addr %s352, 2
      %s354 = scalar_lea.vmem %s3, %s353
      %p355 = scmp.lt.s32.totalorder %s19, 1
      %s356 = scalar_select %p355, %s19, 1
      %s357 = smul.addr %s356, 8
      %s358 = smul.addr %s357, 8
      %s359 = scalar_lea.vmem %s8, %s358
      %v360 = vld [vmem:[%s6] sm:$0xff]
      %v361 = vld [vmem:[%s6 + $0x8] sm:$0xff]
      %v362 = vld [vmem:[%s6 + $0x10] sm:$0xff]
      %v363 = vld [vmem:[%s6 + $0x18] sm:$0xff]
      %v364 = vld [vmem:[%s6 + $0x20] sm:$0xff]
      %v365 = vld [vmem:[%s6 + $0x28] sm:$0xff]
      %v366 = vld [vmem:[%s7] sm:$0xff]
      %v367 = vld [vmem:[%s7 + $0x8] sm:$0xff]
      %v368 = vld [vmem:[%s7 + $0x10] sm:$0xff]
      %v369 = vld [vmem:[%s7 + $0x18] sm:$0xff]
      %v370 = vld [vmem:[%s7 + $0x20] sm:$0xff]
      %v371 = vld [vmem:[%s7 + $0x28] sm:$0xff]
      %v372 = vld [vmem:[%s4] sm:$0xff]
      %v373 = vld [vmem:[%s5] sm:$0xff]
      %v374 = vld [vmem:[%s341] sm:$0xff]
      %v375 = vld [vmem:[%s345] sm:$0x3]
      %v377 = vlaneseq
      %v378 = vshrl.u32 %v377, 7
      %v379 = vsub.s32 0, %v378
      %v380 = vrot.slane %v375, %v379
      %v381 = vlaneseq
      %v382 = vshrl.u32 %v381, 7
      %v383 = vsub.s32 1, %v382
      %v384 = vrot.slane %v375, %v383
      %v385 = vcombine.low %v380, %v384
      %v387 = vmul.f32 %v374, %v385
      %389 = vset.pattern.permute.xlu0 0
      %390 = vperm.xlu0 %389, %v373
      %v391 = vpop.permute.xlu0 %390
      %v394 = vcombine.high %v387, %v387
      %vm395 = vcmask 31744
      %v397 = vsel %vm395, %v372, 0
      %vm399 = vcmask 1043456
      %v400 = vsel %vm399, %v387, 0
      %v402 = vsel %vm399, %v394, 0
      %404 = vmatprep.subr.mxu0 %v402
      %405 = vmatpush1.msra.mxu0 %v400
      %406 = vmatprep.subr.mxu0 0.0
      %407 = vmatpush1.msra.mxu0 0.0
      %408 = vmatprep.subr.mxu0 0.0
      %409 = vmatpush1.msra.mxu0 0.0
      %410 = vmatprep.subr.mxu0 0.0
      %411 = vmatpush1.msra.mxu0 0.0
      %412 = vmatprep.subr.mxu0 0.0
      %413 = vmatpush1.msra.mxu0 0.0
      %414 = vmatprep.subr.mxu0 0.0
      %415 = vmatpush1.msra.mxu0 0.0
      %416 = vmatprep.subr.mxu0 0.0
      %417 = vmatpush1.msra.mxu0 0.0
      %418 = vmatprep.subr.mxu0 0.0
      %419 = vmatpush1.msra.mxu0 0.0
      %420 = vmatprep.subr.mxu0 0.0
      %421 = vmatpush1.msra.mxu0 0.0
      %422 = vmatprep.subr.mxu0 0.0
      %423 = vmatpush1.msra.mxu0 0.0
      %424 = vmatprep.subr.mxu0 0.0
      %425 = vmatpush1.msra.mxu0 0.0
      %426 = vmatprep.subr.mxu0 0.0
      %427 = vmatpush1.msra.mxu0 0.0
      %428 = vmatprep.subr.mxu0 0.0
      %429 = vmatpush1.msra.mxu0 0.0
      %430 = vmatprep.subr.mxu0 0.0
      %431 = vmatpush1.msra.mxu0 0.0
      %432 = vmatprep.subr.mxu0 0.0
      %433 = vmatpush1.msra.mxu0 0.0
      %434 = vmatprep.subr.mxu0 0.0
      %435 = vmatpush1.msra.mxu0 0.0
      %436 = vmatprep.subr.mxu0 0.0
      %437 = vmatpush1.msra.mxu0 0.0
      %438 = vmatprep.subr.mxu0 0.0
      %439 = vmatpush1.msra.mxu0 0.0
      %440 = vmatprep.subr.mxu0 0.0
      %441 = vmatpush1.msra.mxu0 0.0
      %442 = vmatprep.subr.mxu0 0.0
      %443 = vmatpush1.msra.mxu0 0.0
      %444 = vmatprep.subr.mxu0 0.0
      %445 = vmatpush1.msra.mxu0 0.0
      %446 = vmatprep.subr.mxu0 0.0
      %447 = vmatpush1.msra.mxu0 0.0
      %448 = vmatprep.subr.mxu0 0.0
      %449 = vmatpush1.msra.mxu0 0.0
      %450 = vmatprep.subr.mxu0 0.0
      %451 = vmatpush1.msra.mxu0 0.0
      %452 = vmatprep.subr.mxu0 0.0
      %453 = vmatpush1.msra.mxu0 0.0
      %454 = vmatprep.subr.mxu0 0.0
      %455 = vmatpush1.msra.mxu0 0.0
      %456 = vmatprep.subr.mxu0 0.0
      %457 = vmatpush1.msra.mxu0 0.0
      %458 = vmatprep.subr.mxu0 0.0
      %459 = vmatpush1.msra.mxu0 0.0
      %460 = vmatprep.subr.mxu0 0.0
      %461 = vmatpush1.msra.mxu0 0.0
      %462 = vmatprep.subr.mxu0 0.0
      %463 = vmatpush1.msra.mxu0 0.0
      %464 = vmatprep.subr.mxu0 0.0
      %465 = vmatpush1.msra.mxu0 0.0
      %466 = vmatprep.subr.mxu0 0.0
      %467 = vmatpush1.msra.mxu0 0.0
      %468 = vmatprep.mubr.f32.mxu0 0.0
      %469 = vmatmul.mubr.f32.gmra.mrb[0].mxu0 %v397
      %v470 = vpop.f32.mrb[0].mxu0
      %v471 = vadd.f32 %v391, %v470
      %v472 = vpop.f32.mrb[0].mxu0
      %v473 = vadd.f32 %v391, %v472
      %474 = vdwg.mxu0
      %s475 = scalar_lea.vmem %s4, 8
      %v476 = vld [vmem:[%s475] sm:$0xff]
      %s477 = scalar_lea.vmem %s5, 8
      %v478 = vld [vmem:[%s477] sm:$0xff]
      %v479 = vld [vmem:[%s350] sm:$0xff]
      %v480 = vld [vmem:[%s354] sm:$0x3]
      %v482 = vlaneseq
      %v483 = vshrl.u32 %v482, 7
      %v484 = vsub.s32 0, %v483
      %v485 = vrot.slane %v480, %v484
      %v486 = vlaneseq
      %v487 = vshrl.u32 %v486, 7
      %v488 = vsub.s32 1, %v487
      %v489 = vrot.slane %v480, %v488
      %v490 = vcombine.low %v485, %v489
      %v492 = vmul.f32 %v479, %v490
      %494 = vset.pattern.permute.xlu0 0
      %495 = vperm.xlu0 %494, %v478
      %v496 = vpop.permute.xlu0 %495
      %v499 = vcombine.high %v492, %v492
      %v501 = vsel %vm395, %v476, 0
      %v503 = vsel %vm399, %v492, 0
      %v505 = vsel %vm399, %v499, 0
      %507 = vmatprep.subr.mxu0 %v505
      %508 = vmatpush1.msra.mxu0 %v503
      %509 = vmatprep.subr.mxu0 0.0
      %510 = vmatpush1.msra.mxu0 0.0
      %511 = vmatprep.subr.mxu0 0.0
      %512 = vmatpush1.msra.mxu0 0.0
      %513 = vmatprep.subr.mxu0 0.0
      %514 = vmatpush1.msra.mxu0 0.0
      %515 = vmatprep.subr.mxu0 0.0
      %516 = vmatpush1.msra.mxu0 0.0
      %517 = vmatprep.subr.mxu0 0.0
      %518 = vmatpush1.msra.mxu0 0.0
      %519 = vmatprep.subr.mxu0 0.0
      %520 = vmatpush1.msra.mxu0 0.0
      %521 = vmatprep.subr.mxu0 0.0
      %522 = vmatpush1.msra.mxu0 0.0
      %523 = vmatprep.subr.mxu0 0.0
      %524 = vmatpush1.msra.mxu0 0.0
      %525 = vmatprep.subr.mxu0 0.0
      %526 = vmatpush1.msra.mxu0 0.0
      %527 = vmatprep.subr.mxu0 0.0
      %528 = vmatpush1.msra.mxu0 0.0
      %529 = vmatprep.subr.mxu0 0.0
      %530 = vmatpush1.msra.mxu0 0.0
      %531 = vmatprep.subr.mxu0 0.0
      %532 = vmatpush1.msra.mxu0 0.0
      %533 = vmatprep.subr.mxu0 0.0
      %534 = vmatpush1.msra.mxu0 0.0
      %535 = vmatprep.subr.mxu0 0.0
      %536 = vmatpush1.msra.mxu0 0.0
      %537 = vmatprep.subr.mxu0 0.0
      %538 = vmatpush1.msra.mxu0 0.0
      %539 = vmatprep.subr.mxu0 0.0
      %540 = vmatpush1.msra.mxu0 0.0
      %541 = vmatprep.subr.mxu0 0.0
      %542 = vmatpush1.msra.mxu0 0.0
      %543 = vmatprep.subr.mxu0 0.0
      %544 = vmatpush1.msra.mxu0 0.0
      %545 = vmatprep.subr.mxu0 0.0
      %546 = vmatpush1.msra.mxu0 0.0
      %547 = vmatprep.subr.mxu0 0.0
      %548 = vmatpush1.msra.mxu0 0.0
      %549 = vmatprep.subr.mxu0 0.0
      %550 = vmatpush1.msra.mxu0 0.0
      %551 = vmatprep.subr.mxu0 0.0
      %552 = vmatpush1.msra.mxu0 0.0
      %553 = vmatprep.subr.mxu0 0.0
      %554 = vmatpush1.msra.mxu0 0.0
      %555 = vmatprep.subr.mxu0 0.0
      %556 = vmatpush1.msra.mxu0 0.0
      %557 = vmatprep.subr.mxu0 0.0
      %558 = vmatpush1.msra.mxu0 0.0
      %559 = vmatprep.subr.mxu0 0.0
      %560 = vmatpush1.msra.mxu0 0.0
      %561 = vmatprep.subr.mxu0 0.0
      %562 = vmatpush1.msra.mxu0 0.0
      %563 = vmatprep.subr.mxu0 0.0
      %564 = vmatpush1.msra.mxu0 0.0
      %565 = vmatprep.subr.mxu0 0.0
      %566 = vmatpush1.msra.mxu0 0.0
      %567 = vmatprep.subr.mxu0 0.0
      %568 = vmatpush1.msra.mxu0 0.0
      %569 = vmatprep.subr.mxu0 0.0
      %570 = vmatpush1.msra.mxu0 0.0
      %571 = vmatprep.mubr.f32.mxu0 0.0
      %572 = vmatmul.mubr.f32.gmra.mrb[0].mxu0 %v501
      %v573 = vpop.f32.mrb[0].mxu0
      %v574 = vadd.f32 %v496, %v573
      %v575 = vpop.f32.mrb[0].mxu0
      %v576 = vadd.f32 %v496, %v575
      %577 = vdwg.mxu0
      %579 = vset.pattern.permute.xlu0 0
      %580 = vperm.xlu0 %579, %v366
      %v581 = vpop.permute.xlu0 %580
      %584 = vset.pattern.permute.xlu0 0
      %585 = vperm.xlu0 %584, %v367
      %v586 = vpop.permute.xlu0 %585
      %vm588 = vcmask 64512
      %v590 = vsel %vm588, %v360, 0
      %v593 = vsel %vm588, %v361, 0
      %595 = vmatprep.subr.mxu0 0.0
      %596 = vmatpush1.msra.mxu0 %v473
      %597 = vmatprep.subr.mxu0 0.0
      %598 = vmatpush1.msra.mxu0 0.0
      %599 = vmatprep.subr.mxu0 0.0
      %600 = vmatpush1.msra.mxu0 0.0
      %601 = vmatprep.subr.mxu0 0.0
      %602 = vmatpush1.msra.mxu0 0.0
      %603 = vmatprep.subr.mxu0 0.0
      %604 = vmatpush1.msra.mxu0 0.0
      %605 = vmatprep.subr.mxu0 0.0
      %606 = vmatpush1.msra.mxu0 0.0
      %607 = vmatprep.subr.mxu0 0.0
      %608 = vmatpush1.msra.mxu0 0.0
      %609 = vmatprep.subr.mxu0 0.0
      %610 = vmatpush1.msra.mxu0 0.0
      %611 = vmatprep.subr.mxu0 0.0
      %612 = vmatpush1.msra.mxu0 0.0
      %613 = vmatprep.subr.mxu0 0.0
      %614 = vmatpush1.msra.mxu0 0.0
      %615 = vmatprep.subr.mxu0 0.0
      %616 = vmatpush1.msra.mxu0 0.0
      %617 = vmatprep.subr.mxu0 0.0
      %618 = vmatpush1.msra.mxu0 0.0
      %619 = vmatprep.subr.mxu0 0.0
      %620 = vmatpush1.msra.mxu0 0.0
      %621 = vmatprep.subr.mxu0 0.0
      %622 = vmatpush1.msra.mxu0 0.0
      %623 = vmatprep.subr.mxu0 0.0
      %624 = vmatpush1.msra.mxu0 0.0
      %625 = vmatprep.subr.mxu0 0.0
      %626 = vmatpush1.msra.mxu0 0.0
      %627 = vmatprep.subr.mxu0 0.0
      %628 = vmatpush1.msra.mxu0 0.0
      %629 = vmatprep.subr.mxu0 0.0
      %630 = vmatpush1.msra.mxu0 0.0
      %631 = vmatprep.subr.mxu0 0.0
      %632 = vmatpush1.msra.mxu0 0.0
      %633 = vmatprep.subr.mxu0 0.0
      %634 = vmatpush1.msra.mxu0 0.0
      %635 = vmatprep.subr.mxu0 0.0
      %636 = vmatpush1.msra.mxu0 0.0
      %637 = vmatprep.subr.mxu0 0.0
      %638 = vmatpush1.msra.mxu0 0.0
      %639 = vmatprep.subr.mxu0 0.0
      %640 = vmatpush1.msra.mxu0 0.0
      %641 = vmatprep.subr.mxu0 0.0
      %642 = vmatpush1.msra.mxu0 0.0
      %643 = vmatprep.subr.mxu0 0.0
      %644 = vmatpush1.msra.mxu0 0.0
      %645 = vmatprep.subr.mxu0 0.0
      %646 = vmatpush1.msra.mxu0 0.0
      %647 = vmatprep.subr.mxu0 0.0
      %648 = vmatpush1.msra.mxu0 0.0
      %649 = vmatprep.subr.mxu0 0.0
      %650 = vmatpush1.msra.mxu0 0.0
      %651 = vmatprep.subr.mxu0 0.0
      %652 = vmatpush1.msra.mxu0 0.0
      %653 = vmatprep.subr.mxu0 0.0
      %654 = vmatpush1.msra.mxu0 0.0
      %655 = vmatprep.subr.mxu0 0.0
      %656 = vmatpush1.msra.mxu0 0.0
      %657 = vmatprep.subr.mxu0 0.0
      %658 = vmatpush1.msra.mxu0 0.0
      %659 = vmatprep.mubr.f32.mxu0 0.0
      %660 = vmatmul.mubr.f32.gmra.mrb[0].mxu0 %v590
      %v661 = vpop.f32.mrb[0].mxu0
      %v662 = vadd.f32 %v581, %v661
      %v663 = vpop.f32.mrb[0].mxu0
      %664 = vmatprep.mubr.f32.mxu0 0.0
      %665 = vmatmul.mubr.f32.gmra.mrb[0].mxu0 %v593
      %v666 = vpop.f32.mrb[0].mxu0
      %v667 = vadd.f32 %v586, %v666
      %v668 = vpop.f32.mrb[0].mxu0
      %669 = vdwg.mxu0
      %671 = vset.pattern.permute.xlu0 0
      %672 = vperm.xlu0 %671, %v368
      %v673 = vpop.permute.xlu0 %672
      %676 = vset.pattern.permute.xlu0 0
      %677 = vperm.xlu0 %676, %v369
      %v678 = vpop.permute.xlu0 %677
      %v681 = vsel %vm588, %v362, 0
      %v684 = vsel %vm588, %v363, 0
      %686 = vmatprep.subr.mxu0 %v576
      %687 = vmatpush1.msra.mxu0 %v574
      %688 = vmatprep.subr.mxu0 0.0
      %689 = vmatpush1.msra.mxu0 0.0
      %690 = vmatprep.subr.mxu0 0.0
      %691 = vmatpush1.msra.mxu0 0.0
      %692 = vmatprep.subr.mxu0 0.0
      %693 = vmatpush1.msra.mxu0 0.0
      %694 = vmatprep.subr.mxu0 0.0
      %695 = vmatpush1.msra.mxu0 0.0
      %696 = vmatprep.subr.mxu0 0.0
      %697 = vmatpush1.msra.mxu0 0.0
      %698 = vmatprep.subr.mxu0 0.0
      %699 = vmatpush1.msra.mxu0 0.0
      %700 = vmatprep.subr.mxu0 0.0
      %701 = vmatpush1.msra.mxu0 0.0
      %702 = vmatprep.subr.mxu0 0.0
      %703 = vmatpush1.msra.mxu0 0.0
      %704 = vmatprep.subr.mxu0 0.0
      %705 = vmatpush1.msra.mxu0 0.0
      %706 = vmatprep.subr.mxu0 0.0
      %707 = vmatpush1.msra.mxu0 0.0
      %708 = vmatprep.subr.mxu0 0.0
      %709 = vmatpush1.msra.mxu0 0.0
      %710 = vmatprep.subr.mxu0 0.0
      %711 = vmatpush1.msra.mxu0 0.0
      %712 = vmatprep.subr.mxu0 0.0
      %713 = vmatpush1.msra.mxu0 0.0
      %714 = vmatprep.subr.mxu0 0.0
      %715 = vmatpush1.msra.mxu0 0.0
      %716 = vmatprep.subr.mxu0 0.0
      %717 = vmatpush1.msra.mxu0 0.0
      %718 = vmatprep.subr.mxu0 0.0
      %719 = vmatpush1.msra.mxu0 0.0
      %720 = vmatprep.subr.mxu0 0.0
      %721 = vmatpush1.msra.mxu0 0.0
      %722 = vmatprep.subr.mxu0 0.0
      %723 = vmatpush1.msra.mxu0 0.0
      %724 = vmatprep.subr.mxu0 0.0
      %725 = vmatpush1.msra.mxu0 0.0
      %726 = vmatprep.subr.mxu0 0.0
      %727 = vmatpush1.msra.mxu0 0.0
      %728 = vmatprep.subr.mxu0 0.0
      %729 = vmatpush1.msra.mxu0 0.0
      %730 = vmatprep.subr.mxu0 0.0
      %731 = vmatpush1.msra.mxu0 0.0
      %732 = vmatprep.subr.mxu0 0.0
      %733 = vmatpush1.msra.mxu0 0.0
      %734 = vmatprep.subr.mxu0 0.0
      %735 = vmatpush1.msra.mxu0 0.0
      %736 = vmatprep.subr.mxu0 0.0
      %737 = vmatpush1.msra.mxu0 0.0
      %738 = vmatprep.subr.mxu0 0.0
      %739 = vmatpush1.msra.mxu0 0.0
      %740 = vmatprep.subr.mxu0 0.0
      %741 = vmatpush1.msra.mxu0 0.0
      %742 = vmatprep.subr.mxu0 0.0
      %743 = vmatpush1.msra.mxu0 0.0
      %744 = vmatprep.subr.mxu0 0.0
      %745 = vmatpush1.msra.mxu0 0.0
      %746 = vmatprep.subr.mxu0 0.0
      %747 = vmatpush1.msra.mxu0 0.0
      %748 = vmatprep.subr.mxu0 0.0
      %749 = vmatpush1.msra.mxu0 0.0
      %750 = vmatprep.mubr.f32.mxu0 0.0
      %751 = vmatmul.mubr.f32.gmra.mrb[0].mxu0 %v681
      %v752 = vpop.f32.mrb[0].mxu0
      %v753 = vadd.f32 %v673, %v752
      %v754 = vpop.f32.mrb[0].mxu0
      %v755 = vadd.f32 %v673, %v754
      %756 = vmatprep.mubr.f32.mxu0 0.0
      %757 = vmatmul.mubr.f32.gmra.mrb[0].mxu0 %v684
      %v758 = vpop.f32.mrb[0].mxu0
      %v759 = vadd.f32 %v678, %v758
      %v760 = vpop.f32.mrb[0].mxu0
      %v761 = vadd.f32 %v678, %v760
      %762 = vdwg.mxu0
      %764 = vset.pattern.permute.xlu0 0
      %765 = vperm.xlu0 %764, %v370
      %v766 = vpop.permute.xlu0 %765
      %769 = vset.pattern.permute.xlu0 0
      %770 = vperm.xlu0 %769, %v371
      %v771 = vpop.permute.xlu0 %770
      %v774 = vsel %vm588, %v364, 0
      %v777 = vsel %vm588, %v365, 0
      %779 = vmatprep.subr.mxu0 %v473
      %780 = vmatpush1.msra.mxu0 %v471
      %781 = vmatprep.subr.mxu0 0.0
      %782 = vmatpush1.msra.mxu0 0.0
      %783 = vmatprep.subr.mxu0 0.0
      %784 = vmatpush1.msra.mxu0 0.0
      %785 = vmatprep.subr.mxu0 0.0
      %786 = vmatpush1.msra.mxu0 0.0
      %787 = vmatprep.subr.mxu0 0.0
      %788 = vmatpush1.msra.mxu0 0.0
      %789 = vmatprep.subr.mxu0 0.0
      %790 = vmatpush1.msra.mxu0 0.0
      %791 = vmatprep.subr.mxu0 0.0
      %792 = vmatpush1.msra.mxu0 0.0
      %793 = vmatprep.subr.mxu0 0.0
      %794 = vmatpush1.msra.mxu0 0.0
      %795 = vmatprep.subr.mxu0 0.0
      %796 = vmatpush1.msra.mxu0 0.0
      %797 = vmatprep.subr.mxu0 0.0
      %798 = vmatpush1.msra.mxu0 0.0
      %799 = vmatprep.subr.mxu0 0.0
      %800 = vmatpush1.msra.mxu0 0.0
      %801 = vmatprep.subr.mxu0 0.0
      %802 = vmatpush1.msra.mxu0 0.0
      %803 = vmatprep.subr.mxu0 0.0
      %804 = vmatpush1.msra.mxu0 0.0
      %805 = vmatprep.subr.mxu0 0.0
      %806 = vmatpush1.msra.mxu0 0.0
      %807 = vmatprep.subr.mxu0 0.0
      %808 = vmatpush1.msra.mxu0 0.0
      %809 = vmatprep.subr.mxu0 0.0
      %810 = vmatpush1.msra.mxu0 0.0
      %811 = vmatprep.subr.mxu0 0.0
      %812 = vmatpush1.msra.mxu0 0.0
      %813 = vmatprep.subr.mxu0 0.0
      %814 = vmatpush1.msra.mxu0 0.0
      %815 = vmatprep.subr.mxu0 0.0
      %816 = vmatpush1.msra.mxu0 0.0
      %817 = vmatprep.subr.mxu0 0.0
      %818 = vmatpush1.msra.mxu0 0.0
      %819 = vmatprep.subr.mxu0 0.0
      %820 = vmatpush1.msra.mxu0 0.0
      %821 = vmatprep.subr.mxu0 0.0
      %822 = vmatpush1.msra.mxu0 0.0
      %823 = vmatprep.subr.mxu0 0.0
      %824 = vmatpush1.msra.mxu0 0.0
      %825 = vmatprep.subr.mxu0 0.0
      %826 = vmatpush1.msra.mxu0 0.0
      %827 = vmatprep.subr.mxu0 0.0
      %828 = vmatpush1.msra.mxu0 0.0
      %829 = vmatprep.subr.mxu0 0.0
      %830 = vmatpush1.msra.mxu0 0.0
      %831 = vmatprep.subr.mxu0 0.0
      %832 = vmatpush1.msra.mxu0 0.0
      %833 = vmatprep.subr.mxu0 0.0
      %834 = vmatpush1.msra.mxu0 0.0
      %835 = vmatprep.subr.mxu0 0.0
      %836 = vmatpush1.msra.mxu0 0.0
      %837 = vmatprep.subr.mxu0 0.0
      %838 = vmatpush1.msra.mxu0 0.0
      %839 = vmatprep.subr.mxu0 0.0
      %840 = vmatpush1.msra.mxu0 0.0
      %841 = vmatprep.subr.mxu0 0.0
      %842 = vmatpush1.msra.mxu0 0.0
      %843 = vmatprep.mubr.f32.mxu0 0.0
      %844 = vmatmul.mubr.f32.gmra.mrb[0].mxu0 %v774
      %v845 = vpop.f32.mrb[0].mxu0
      %v846 = vadd.f32 %v766, %v845
      %v847 = vpop.f32.mrb[0].mxu0
      %v848 = vadd.f32 %v766, %v847
      %849 = vmatprep.mubr.f32.mxu0 0.0
      %850 = vmatmul.mubr.f32.gmra.mrb[0].mxu0 %v777
      %v851 = vpop.f32.mrb[0].mxu0
      %v852 = vadd.f32 %v771, %v851
      %v853 = vpop.f32.mrb[0].mxu0
      %v854 = vadd.f32 %v771, %v853
      %855 = vdwg.mxu0
      %v856 = vmul.f32 %v662, %v753
      %vm857 = vcmask 523264
      %v858 = vsel %vm857, %v856, 0.0
      %859 = vadd.xlane.f32.xlu0 %v858
      %v860 = vpop.xlane.xlu0 %859
      %v861 = vrot.slane %v860, 4
      %v862 = vadd.f32 %v860, %v861
      %v863 = vrot.slane %v862, 2
      %v864 = vadd.f32 %v862, %v863
      %v865 = vrot.slane %v864, 1
      %v866 = vadd.f32 %v864, %v865
      %868 = vrot.lane.b32.xlu0 %v753, 64
      %v869 = vpop.permute.xlu0 %868
      %v871 = vmul.f32 %v662, %v869
      %v872 = vsel %vm857, %v871, 0.0
      %873 = vadd.xlane.f32.xlu0 %v872
      %v874 = vpop.xlane.xlu0 %873
      %v875 = vrot.slane %v874, 4
      %v876 = vadd.f32 %v874, %v875
      %v877 = vrot.slane %v876, 2
      %v878 = vadd.f32 %v876, %v877
      %v879 = vrot.slane %v878, 1
      %v880 = vadd.f32 %v878, %v879
      %v881 = vmul.f32 %v662, %v755
      %v882 = vsel %vm857, %v881, 0.0
      %883 = vadd.xlane.f32.xlu0 %v882
      %v884 = vpop.xlane.xlu0 %883
      %v885 = vrot.slane %v884, 4
      %v886 = vadd.f32 %v884, %v885
      %v887 = vrot.slane %v886, 2
      %v888 = vadd.f32 %v886, %v887
      %v889 = vrot.slane %v888, 1
      %v890 = vadd.f32 %v888, %v889
      %vm891 = vcmask 7168
      %v892 = vsel %vm891, %v866, %v880
      %vm893 = vcmask 15360
      %v894 = vsel %vm893, %v892, %v890
      %vm895 = vcmask 16384
      %v896 = vsel %vm895, %v894, -inf
      %897 = vmax.xlane.f32.xlu0 %v896
      %v898 = vpop.xlane.xlu0 %897
      %v899 = vsub.f32 %v894, %v898
      %v900 = vmul.f32 %v899, 1.442695
      %v901 = vpow.pop %v900
      %v902 = vsel %vm895, %v901, 0.0
      %903 = vadd.xlane.f32.xlu0 %v902
      %v904 = vpop.xlane.xlu0 %903
      %v905 = vrcp.pop %v904
      %v906 = vmul.f32 %v901, %v905
      %s908 = vtos %v906
      %v909 = vstv %s908
      %v911 = vmul.f32 %v909, %v759
      %v912 = vadd.f32 %v911, 0.0
      %913 = vrot.lane.b32.xlu0 %v906, 127
      %v914 = vpop.permute.xlu0 %913
      %s915 = vtos %v914
      %v916 = vstv %s915
      %v918 = vmul.f32 %v916, %v759
      %920 = vrot.lane.b32.xlu0 %v918, 64
      %v921 = vpop.permute.xlu0 %920
      %v923 = vadd.f32 %v912, %v921
      %924 = vrot.lane.b32.xlu0 %v906, 126
      %v925 = vpop.permute.xlu0 %924
      %s926 = vtos %v925
      %v927 = vstv %s926
      %v929 = vmul.f32 %v927, %v761
      %v930 = vadd.f32 %v923, %v929
      %v931 = vadd.f32 %v473, %v930
      %v932 = vmul.f32 %v667, %v846
      %v933 = vsel %vm857, %v932, 0.0
      %934 = vadd.xlane.f32.xlu0 %v933
      %v935 = vpop.xlane.xlu0 %934
      %v936 = vrot.slane %v935, 4
      %v937 = vadd.f32 %v935, %v936
      %v938 = vrot.slane %v937, 2
      %v939 = vadd.f32 %v937, %v938
      %v940 = vrot.slane %v939, 1
      %v941 = vadd.f32 %v939, %v940
      %943 = vrot.lane.b32.xlu0 %v846, 64
      %v944 = vpop.permute.xlu0 %943
      %v946 = vmul.f32 %v667, %v944
      %v947 = vsel %vm857, %v946, 0.0
      %948 = vadd.xlane.f32.xlu0 %v947
      %v949 = vpop.xlane.xlu0 %948
      %v950 = vrot.slane %v949, 4
      %v951 = vadd.f32 %v949, %v950
      %v952 = vrot.slane %v951, 2
      %v953 = vadd.f32 %v951, %v952
      %v954 = vrot.slane %v953, 1
      %v955 = vadd.f32 %v953, %v954
      %v956 = vmul.f32 %v667, %v848
      %v957 = vsel %vm857, %v956, 0.0
      %958 = vadd.xlane.f32.xlu0 %v957
      %v959 = vpop.xlane.xlu0 %958
      %v960 = vrot.slane %v959, 4
      %v961 = vadd.f32 %v959, %v960
      %v962 = vrot.slane %v961, 2
      %v963 = vadd.f32 %v961, %v962
      %v964 = vrot.slane %v963, 1
      %v965 = vadd.f32 %v963, %v964
      %967 = vrot.lane.b32.xlu0 %v848, 64
      %v968 = vpop.permute.xlu0 %967
      %v970 = vmul.f32 %v667, %v968
      %v971 = vsel %vm857, %v970, 0.0
      %972 = vadd.xlane.f32.xlu0 %v971
      %v973 = vpop.xlane.xlu0 %972
      %v974 = vrot.slane %v973, 4
      %v975 = vadd.f32 %v973, %v974
      %v976 = vrot.slane %v975, 2
      %v977 = vadd.f32 %v975, %v976
      %v978 = vrot.slane %v977, 1
      %v979 = vadd.f32 %v977, %v978
      %v980 = vsel %vm891, %v941, %v955
      %v981 = vsel %vm893, %v980, %v965
      %vm982 = vcmask 23552
      %v983 = vsel %vm982, %v981, %v979
      %vm984 = vcmask 24576
      %v985 = vsel %vm984, %v983, -inf
      %986 = vmax.xlane.f32.xlu0 %v985
      %v987 = vpop.xlane.xlu0 %986
      %v988 = vsub.f32 %v983, %v987
      %v989 = vmul.f32 %v988, 1.442695
      %v990 = vpow.pop %v989
      %v991 = vsel %vm984, %v990, 0.0
      %992 = vadd.xlane.f32.xlu0 %v991
      %v993 = vpop.xlane.xlu0 %992
      %v994 = vrcp.pop %v993
      %v995 = vmul.f32 %v990, %v994
      %s997 = vtos %v995
      %v998 = vstv %s997
      %v1000 = vmul.f32 %v998, %v852
      %v1001 = vadd.f32 %v1000, 0.0
      %1002 = vrot.lane.b32.xlu0 %v995, 127
      %v1003 = vpop.permute.xlu0 %1002
      %s1004 = vtos %v1003
      %v1005 = vstv %s1004
      %v1007 = vmul.f32 %v1005, %v852
      %1009 = vrot.lane.b32.xlu0 %v1007, 64
      %v1010 = vpop.permute.xlu0 %1009
      %v1012 = vadd.f32 %v1001, %v1010
      %1013 = vrot.lane.b32.xlu0 %v995, 126
      %v1014 = vpop.permute.xlu0 %1013
      %s1015 = vtos %v1014
      %v1016 = vstv %s1015
      %v1018 = vmul.f32 %v1016, %v854
      %v1019 = vadd.f32 %v1012, %v1018
      %1020 = vrot.lane.b32.xlu0 %v995, 125
      %v1021 = vpop.permute.xlu0 %1020
      %s1022 = vtos %v1021
      %v1023 = vstv %s1022
      %v1025 = vmul.f32 %v1023, %v854
      %1027 = vrot.lane.b32.xlu0 %v1025, 64
      %v1028 = vpop.permute.xlu0 %1027
      %v1030 = vadd.f32 %v1019, %v1028
      %v1031 = vadd.f32 %v473, %v1030
      %v1032 = vadd.f32 %v471, %v931
      %v1033 = vadd.f32 %v471, %v1031
      %1035 = vrot.lane.b32.xlu0 %v931, 64
      %v1036 = vpop.permute.xlu0 %1035
      %v1038 = vadd.f32 %v471, %v1036
      %1040 = vrot.lane.b32.xlu0 %v1031, 64
      %v1041 = vpop.permute.xlu0 %1040
      %v1043 = vadd.f32 %v471, %v1041
      %v1044 = vadd.f32 %v473, %v931
      %v1045 = vadd.f32 %v473, %v1031
      %v1046 = vadd.f32 %v473, %v1036
      %v1047 = vadd.f32 %v473, %v1041
      %1049 = vrot.lane.b32.xlu0 %v1038, 64
      %v1050 = vpop.permute.xlu0 %1049
      %1053 = vrot.lane.b32.xlu0 %v1043, 64
      %v1054 = vpop.permute.xlu0 %1053
      %1057 = vrot.lane.b32.xlu0 %v1046, 64
      %v1058 = vpop.permute.xlu0 %1057
      %1061 = vrot.lane.b32.xlu0 %v1047, 64
      %v1062 = vpop.permute.xlu0 %1061
      %1064 = vst.msk [vmem:[%s359] sm:$0xff] %vm857, %v1032
      %1065 = vst.msk [vmem:[%s359 + $0x8] sm:$0xff] %vm857, %v1033
      %1066 = vst.msk [vmem:[%s359 + $0x10] sm:$0xff] %vm857, %v1050
      %1067 = vst.msk [vmem:[%s359 + $0x18] sm:$0xff] %vm857, %v1054
      %1068 = vst.msk [vmem:[%s359 + $0x20] sm:$0xff] %vm857, %v1044
      %1069 = vst.msk [vmem:[%s359 + $0x28] sm:$0xff] %vm857, %v1045
      %1070 = vst.msk [vmem:[%s359 + $0x30] sm:$0xff] %vm857, %v1058
      %1071 = vst.msk [vmem:[%s359 + $0x38] sm:$0xff] %vm857, %v1062
      %p1072 = scmp.lt.s32.totalorder %s19, 1
      %s1073 = scalar_select %p1072, %s19, 1
      %s1074 = smul.addr %s1073, 8
      %s1075 = smul.addr %s1074, 8
      %s1076 = scalar_lea.vmem %s8, %s1075
      // Predicated region
      $region53: #{_lambda_.1} parent=51 // pred_check
        %p1077 = pneg %p225
      $region54: #{_lambda_.1} parent=51 // pred_check_branch
        %1079 = sbr.rel (%p1077) target = $region56
      $region55: #{_lambda_.1} parent=51 // pred_region
        _
      $region56: #{_lambda_.1} parent=51 // pred_fallthru
        _
    $region52: #{_lambda_.1} parent=5 // pred_fallthru
      _
    %p1080 = scmp.le.s32.totalorder 2, %s14
    // Predicated region
    $region57: #{_lambda_.1} parent=5 // pred_check
      %p1081 = pneg %p1080
    $region58: #{_lambda_.1} parent=5 // pred_check_branch
      %1083 = sbr.rel (%p1081) target = $region60
    $region59: #{_lambda_.1} parent=5 // pred_region
      %s1084 = ssub.s32 %s14, 2
      // Predicated region
      $region61: #{_lambda_.1} parent=59 // pred_check
        %p1085 = pneg %p231
      $region62: #{_lambda_.1} parent=59 // pred_check_branch
        %1087 = sbr.rel (%p1085) target = $region64
      $region63: #{_lambda_.1} parent=59 // pred_region
        %p1088 = scmp.lt.s32.totalorder %s20, 1
        %s1089 = scalar_select %p1088, %s20, 1
        %s1090 = smul.addr %s1089, 8
        %s1091 = smul.addr %s1090, 8
        %s1092 = scalar_lea.vmem %s8, %s1091
      $region64: #{_lambda_.1} parent=59 // pred_fallthru
        _
    $region60: #{_lambda_.1} parent=5 // pred_fallthru
      _
  $region6: #{_lambda_.1} parent=0 // loop_footer
    %s18 = sadd.s32 1, %s14
  $region7: #{_lambda_.1} parent=0 // loop_footer_branch
    %13 = sbr.rel target = $region3
  $region8: #{_lambda_.1} parent=0 // loop_exit
    _

</llo_original>
